<compile_context>
chip_gen: v5e
topology: v5e:2x2
jax: 0.10.0
libtpu: 0.0.40
codegen_flags: <defaults>
</compile_context>

<pallas_src>
import functools

import jax
import jax.numpy as jnp
from jax import lax
from jax.experimental import pallas as pl
from jax.experimental.pallas import tpu as pltpu


def _round_up(x, m):
    return ((x + m - 1) // m) * m


def _conv_max_relu_proj(x, wconv_ref, bconv_ref, wproj_ref, bproj_ref, out_ref,
                        *, seq_len, window_size):
    """Common tail: im2col conv -> masked max over time -> ReLU -> projection.

    x: (TB*L, E) float32 embeddings for TB batch rows (time-major per row).
    """
    M, E = x.shape
    L = seq_len
    K = window_size
    TB = M // L
    l_out = L - K + 1
    KEp, F = wconv_ref.shape

    # im2col along the lane axis via sublane rotations (XLU): piece k holds
    # x[(r + k) % M].  Wrapped / cross-batch rows only land at time positions
    # t >= l_out, which are masked out before the max below, so they never
    # contribute to the result.
    pieces = [x]
    for k in range(1, K):
        pieces.append(pltpu.roll(x, shift=M - k, axis=0))
    if KEp > K * E:  # pad contraction dim up to a full 128-lane tile
        pieces.append(jnp.zeros((M, KEp - K * E), jnp.float32))
    cols = pieces[0] if len(pieces) == 1 else jnp.concatenate(pieces, axis=1)

    # Conv1d as a single MXU matmul, f32 accumulation.
    acc = jnp.dot(cols.astype(wconv_ref.dtype), wconv_ref[...],
                  preferred_element_type=jnp.float32)            # (M, F)

    # Max over valid time positions: mask t >= l_out with -inf and reduce over
    # the full, sublane-aligned group of L rows (no unaligned l_out slice).
    acc3 = acc.reshape(TB, L, F)
    t_idx = lax.broadcasted_iota(jnp.int32, (TB, L, F), 1)
    h = jnp.max(jnp.where(t_idx < l_out, acc3, -jnp.inf), axis=1)  # (TB, F)

    # Conv bias is constant over time, so adding it after the max is exact.
    h = jnp.maximum(h + bconv_ref[...], 0.0)

    # Projection; one lane-dense (TB, Tp) store per grid step.
    out = jnp.dot(h.astype(wproj_ref.dtype), wproj_ref[...],
                  preferred_element_type=jnp.float32) + bproj_ref[...]
    out_ref[...] = out.astype(out_ref.dtype)


def _cnn_kernel_fused(ids_ref, table_ref, wconv_ref, bconv_ref, wproj_ref,
                      bproj_ref, out_ref, *, seq_len, window_size):
    # Fused embedding lookup: one-hot MXU gather against the VMEM-resident,
    # vocab-padded table.  Exact: each output row copies one bf16 table row.
    M = ids_ref.shape[0]                                  # TB * L
    Vp = table_ref.shape[0]
    ids = ids_ref[...]                                    # (M, 1) int32
    onehot = lax.broadcasted_iota(jnp.int32, (M, Vp), 1) == ids
    x = jnp.dot(onehot.astype(table_ref.dtype), table_ref[...],
                preferred_element_type=jnp.float32)       # (M, E) f32
    _conv_max_relu_proj(x, wconv_ref, bconv_ref, wproj_ref, bproj_ref, out_ref,
                        seq_len=seq_len, window_size=window_size)


def _cnn_kernel_pregathered(emb_ref, wconv_ref, bconv_ref, wproj_ref,
                            bproj_ref, out_ref, *, seq_len, window_size):
    # Fallback for large vocabularies: embeddings gathered in the wrapper.
    TB, L, E = emb_ref.shape
    x = emb_ref[...].reshape(TB * L, E).astype(jnp.float32)
    _conv_max_relu_proj(x, wconv_ref, bconv_ref, wproj_ref, bproj_ref, out_ref,
                        seq_len=seq_len, window_size=window_size)


def simple_cnn_forward(words, emb_table, conv_w, conv_b, proj_w, proj_b,
                       *, batch_tile=None, compute_dtype=jnp.bfloat16,
                       max_fused_vocab=4096):
    """simpleCNN forward.

    words     : (B, L) int32 token ids
    emb_table : (nwords, E) f32
    conv_w    : (F, E, K) f32   (torch nn.Conv1d weight layout)
    conv_b    : (F,)      f32
    proj_w    : (T, F)    f32   (torch nn.Linear weight layout)
    proj_b    : (T,)      f32
    returns   : (B, T) f32 logits
    """
    B, L = words.shape
    nwords, E = emb_table.shape
    F, E2, K = conv_w.shape
    T = proj_w.shape[0]
    assert E2 == E and L >= K

    # Batch tile: large enough to fill the MXU and amortize per-grid-step
    # pipeline overhead, capped so the grid keeps >= 2 steps (both v7x TCs).
    if batch_tile is None:
        TB = min(256, max(8, _round_up(B, 8) // 2))
    else:
        TB = batch_tile
    TB = max(8, _round_up(TB, 8))
    B_pad = _round_up(B, TB)
    M = TB * L                                    # rows per grid step

    # Conv weight -> im2col layout, contraction padded to a 128-lane tile:
    # wconv[k*E + e, f] = conv_w[f, e, k].
    KE = K * E
    KEp = _round_up(KE, 128)
    wconv = jnp.zeros((KEp, F), compute_dtype).at[:KE, :].set(
        jnp.transpose(conv_w, (2, 1, 0)).reshape(KE, F).astype(compute_dtype))
    bconv = conv_b.astype(jnp.float32).reshape(1, F)

    # Projection weight -> (F, Tp), zero-padded to a lane-dense output width.
    Tp = _round_up(T, 128)
    wproj = jnp.zeros((F, Tp), compute_dtype).at[:, :T].set(
        proj_w.T.astype(compute_dtype))
    bproj = jnp.zeros((1, Tp), jnp.float32).at[:, :T].set(
        proj_b.astype(jnp.float32)[None, :])

    words_pad = words.astype(jnp.int32)
    if B_pad != B:
        words_pad = jnp.pad(words_pad, ((0, B_pad - B), (0, 0)))

    Vp = _round_up(nwords, 128)
    fuse_embedding = Vp <= max_fused_vocab

    weight_specs = [
        pl.BlockSpec((KEp, F), lambda b: (0, 0)),   # conv weight (resident)
        pl.BlockSpec((1, F), lambda b: (0, 0)),     # conv bias
        pl.BlockSpec((F, Tp), lambda b: (0, 0)),    # proj weight (resident)
        pl.BlockSpec((1, Tp), lambda b: (0, 0)),    # proj bias
    ]
    out_spec = pl.BlockSpec((TB, Tp), lambda b: (b, 0))
    out_shape = jax.ShapeDtypeStruct((B_pad, Tp), jnp.float32)
    compiler_params = pltpu.CompilerParams(
        dimension_semantics=("parallel",),
        # Above the scoped defaults (16 MiB v5e / 32 MiB v6e+v7x), below v7x's
        # 64 MiB physical VMEM; actual per-step usage stays well under this.
        vmem_limit_bytes=48 * 1024 * 1024)

    if fuse_embedding:
        # Gather fused into the kernel: table resident in VMEM, one-hot MXU
        # lookup.  Removes the extra HBM pass over the (B, L, E) activation.
        table = jnp.zeros((Vp, E), compute_dtype).at[:nwords, :].set(
            emb_table.astype(compute_dtype))
        ids_flat = words_pad.reshape(B_pad * L, 1)
        kernel = functools.partial(_cnn_kernel_fused, seq_len=L, window_size=K)
        out = pl.pallas_call(
            kernel,
            out_shape=out_shape,
            grid_spec=pltpu.PrefetchScalarGridSpec(
                num_scalar_prefetch=0,
                grid=(B_pad // TB,),
                in_specs=[
                    pl.BlockSpec((M, 1), lambda b: (b, 0)),    # token ids tile
                    pl.BlockSpec((Vp, E), lambda b: (0, 0)),   # embedding table
                ] + weight_specs,
                out_specs=out_spec),
            compiler_params=compiler_params,
        )(ids_flat, table, wconv, bconv, wproj, bproj)
    else:
        # TODO(synk): for large vocabularies, replace this wrapper-side gather
        # (extra HBM pass over (B, L, E)) with an in-kernel DMA row gather of
        # table rows driven by scalar-prefetched ids.
        embeds = jnp.take(emb_table.astype(compute_dtype), words_pad, axis=0)
        kernel = functools.partial(_cnn_kernel_pregathered, seq_len=L,
                                   window_size=K)
        out = pl.pallas_call(
            kernel,
            out_shape=out_shape,
            grid_spec=pltpu.PrefetchScalarGridSpec(
                num_scalar_prefetch=0,
                grid=(B_pad // TB,),
                in_specs=[
                    pl.BlockSpec((TB, L, E), lambda b: (b, 0, 0)),
                ] + weight_specs,
                out_specs=out_spec),
            compiler_params=compiler_params,
        )(embeds, wconv, bconv, wproj, bproj)

    # TODO(synk): for very large B, store bf16 logits (or a (T, B) layout) to
    # shrink the padded (B_pad, 128) f32 output stream.
    return out[:B, :T]


def _reference_forward(words, emb_table, conv_w, conv_b, proj_w, proj_b):
    """Pure-JAX f32 reference matching the PyTorch module semantics."""
    emb = jnp.take(emb_table, words, axis=0)                     # (B, L, E)
    F, E, K = conv_w.shape
    L = emb.shape[1]
    l_out = L - K + 1
    h = jnp.zeros((emb.shape[0], l_out, F), jnp.float32)
    for k in range(K):
        h = h + jnp.einsum('ble,fe->blf', emb[:, k:k + l_out, :], conv_w[:, :, k])
    h = h + conv_b[None, None, :]
    h = jnp.max(h, axis=1)
    h = jnp.maximum(h, 0.0)
    return h @ proj_w.T + proj_b[None, :]


if __name__ == "__main__":
    # Small deterministic configuration consistent with the module signature.
    nwords, emb_size, num_filters, window_size, ntags = 100, 32, 64, 3, 8
    batch, seq_len = 16, 16

    key = jax.random.PRNGKey(0)
    k_emb, k_wc, k_bc, k_wp, k_words = jax.random.split(key, 5)

    # embedding: uniform(-0.25, 0.25) like the 'random' init branch, pad idx 0 zeroed
    emb_table = jax.random.uniform(k_emb, (nwords, emb_size),
                                   minval=-0.25, maxval=0.25, dtype=jnp.float32)
    emb_table = emb_table.at[0].set(0.0)

    # Conv1d params in torch layout (F, E, K)
    bound_c = (1.0 / (emb_size * window_size)) ** 0.5
    conv_w = jax.random.uniform(k_wc, (num_filters, emb_size, window_size),
                                minval=-bound_c, maxval=bound_c, dtype=jnp.float32)
    conv_b = jax.random.uniform(k_bc, (num_filters,),
                                minval=-bound_c, maxval=bound_c, dtype=jnp.float32)

    # Linear params in torch layout (T, F), xavier_uniform weight, zero bias
    bound_p = (6.0 / (num_filters + ntags)) ** 0.5
    proj_w = jax.random.uniform(k_wp, (ntags, num_filters),
                                minval=-bound_p, maxval=bound_p, dtype=jnp.float32)
    proj_b = jnp.zeros((ntags,), jnp.float32)

    words = jax.random.randint(k_words, (batch, seq_len), 0, nwords, dtype=jnp.int32)

    out = simple_cnn_forward(words, emb_table, conv_w, conv_b, proj_w, proj_b)
    out = jax.block_until_ready(out)
    assert out.shape == (batch, ntags) and out.dtype == jnp.float32

    ref = _reference_forward(words, emb_table, conv_w, conv_b, proj_w, proj_b)
    assert bool(jnp.allclose(out, ref, atol=5e-2, rtol=5e-2)), \
        f"max abs err {float(jnp.max(jnp.abs(out - ref)))}"

    print("KERNEL_OK")
</pallas_src>

<mosaic_0001>
module attributes {stable_mosaic.version = 11 : i64} {
  func.func @_cnn_kernel_fused(%arg0: i32, %arg1: memref<128x1xi32, #tpu.memory_space<vmem>>, %arg2: memref<128x32xbf16, #tpu.memory_space<vmem>>, %arg3: memref<128x64xbf16, #tpu.memory_space<vmem>>, %arg4: memref<1x64xf32, #tpu.memory_space<vmem>>, %arg5: memref<64x128xbf16, #tpu.memory_space<vmem>>, %arg6: memref<1x128xf32, #tpu.memory_space<vmem>>, %arg7: memref<8x128xf32, #tpu.memory_space<vmem>>) attributes {dimension_semantics = [#tpu.dimension_semantics<parallel>], iteration_bounds = array<i64: 2>, scalar_prefetch = 0 : i64, scratch_operands = 0 : i64, tpu.core_type = #tpu.core_type<tc>, window_params = [{transform_indices = @transform_0, window_bounds = array<i64: 128, 1>}, {pipeline_mode = #tpu.pipeline_mode<synchronous>, transform_indices = @transform_1, window_bounds = array<i64: 128, 32>}, {pipeline_mode = #tpu.pipeline_mode<synchronous>, transform_indices = @transform_2, window_bounds = array<i64: 128, 64>}, {pipeline_mode = #tpu.pipeline_mode<synchronous>, transform_indices = @transform_3, window_bounds = array<i64: 1, 64>}, {pipeline_mode = #tpu.pipeline_mode<synchronous>, transform_indices = @transform_4, window_bounds = array<i64: 64, 128>}, {pipeline_mode = #tpu.pipeline_mode<synchronous>, transform_indices = @transform_5, window_bounds = array<i64: 1, 128>}, {transform_indices = @transform_6, window_bounds = array<i64: 8, 128>}]} {
    %c0 = arith.constant 0 : index
    %c0_0 = arith.constant 0 : index
    %0 = vector.load %arg1[%c0, %c0_0] : memref<128x1xi32, #tpu.memory_space<vmem>>, vector<128x1xi32>
    %1 = tpu.iota {dimensions = array<i32: 1>} : vector<128x128xi32>
    %2 = vector.broadcast %0 : vector<128x1xi32> to vector<128x128xi32>
    %3 = arith.cmpi eq, %1, %2 : vector<128x128xi32>
    %4 = arith.extui %3 : vector<128x128xi1> to vector<128x128xi32>
    %5 = arith.sitofp %4 : vector<128x128xi32> to vector<128x128xf32>
    %6 = arith.truncf %5 : vector<128x128xf32> to vector<128x128xbf16>
    %c0_1 = arith.constant 0 : index
    %c0_2 = arith.constant 0 : index
    %7 = vector.load %arg2[%c0_1, %c0_2] : memref<128x32xbf16, #tpu.memory_space<vmem>>, vector<128x32xbf16>
    %cst = arith.constant dense<0.000000e+00> : vector<128x32xf32>
    %8 = tpu.matmul %6, %7, %cst {dimension_numbers = #tpu.dot_dimension_numbers<[1], [0], [0], [1], [0, 0, 1, 1], [], []>} : vector<128x128xbf16>, vector<128x32xbf16>, vector<128x32xf32> -> vector<128x32xf32>
    %c127_i32 = arith.constant 127 : i32
    %9 = tpu.dynamic_rotate %8 by %c127_i32 dim 0 : vector<128x32xf32>, i32 -> vector<128x32xf32>
    %c126_i32 = arith.constant 126 : i32
    %10 = tpu.dynamic_rotate %8 by %c126_i32 dim 0 : vector<128x32xf32>, i32 -> vector<128x32xf32>
    %cst_3 = arith.constant 0.000000e+00 : f32
    %11 = vector.broadcast %cst_3 : f32 to vector<128x32xf32>
    %12 = tpu.concatenate %8, %9, %10, %11 in 1 : vector<128x32xf32>, vector<128x32xf32>, vector<128x32xf32>, vector<128x32xf32> -> vector<128x128xf32>
    %13 = arith.truncf %12 : vector<128x128xf32> to vector<128x128xbf16>
    %c0_4 = arith.constant 0 : index
    %c0_5 = arith.constant 0 : index
    %14 = vector.load %arg3[%c0_4, %c0_5] : memref<128x64xbf16, #tpu.memory_space<vmem>>, vector<128x64xbf16>
    %cst_6 = arith.constant dense<0.000000e+00> : vector<128x64xf32>
    %15 = tpu.matmul %13, %14, %cst_6 {dimension_numbers = #tpu.dot_dimension_numbers<[1], [0], [0], [1], [0, 0, 1, 1], [], []>} : vector<128x128xbf16>, vector<128x64xbf16>, vector<128x64xf32> -> vector<128x64xf32>
    %16 = vector.shape_cast %15 : vector<128x64xf32> to vector<8x16x64xf32>
    %17 = tpu.iota {dimensions = array<i32: 1>} : vector<8x16x64xi32>
    %c14_i32 = arith.constant 14 : i32
    %18 = vector.broadcast %c14_i32 : i32 to vector<8x16x64xi32>
    %19 = arith.cmpi slt, %17, %18 : vector<8x16x64xi32>
    %cst_7 = arith.constant 0xFF800000 : f32
    %20 = vector.broadcast %cst_7 : f32 to vector<8x16x64xf32>
    %21 = arith.select %19, %16, %20 : vector<8x16x64xi1>, vector<8x16x64xf32>
    %cst_8 = arith.constant dense<0xFF800000> : vector<8x64xf32>
    %22 = vector.multi_reduction <maximumf>, %21, %cst_8 [1] : vector<8x16x64xf32> to vector<8x64xf32>
    %c0_9 = arith.constant 0 : index
    %c0_10 = arith.constant 0 : index
    %23 = vector.load %arg4[%c0_9, %c0_10] : memref<1x64xf32, #tpu.memory_space<vmem>>, vector<1x64xf32>
    %24 = vector.broadcast %23 : vector<1x64xf32> to vector<8x64xf32>
    %25 = arith.addf %22, %24 : vector<8x64xf32>
    %cst_11 = arith.constant 0.000000e+00 : f32
    %26 = vector.broadcast %cst_11 : f32 to vector<8x64xf32>
    %27 = arith.maximumf %25, %26 : vector<8x64xf32>
    %28 = arith.truncf %27 : vector<8x64xf32> to vector<8x64xbf16>
    %c0_12 = arith.constant 0 : index
    %c0_13 = arith.constant 0 : index
    %29 = vector.load %arg5[%c0_12, %c0_13] : memref<64x128xbf16, #tpu.memory_space<vmem>>, vector<64x128xbf16>
    %cst_14 = arith.constant dense<0.000000e+00> : vector<8x128xf32>
    %30 = tpu.matmul %28, %29, %cst_14 {dimension_numbers = #tpu.dot_dimension_numbers<[1], [0], [0], [1], [0, 0, 1, 1], [], []>} : vector<8x64xbf16>, vector<64x128xbf16>, vector<8x128xf32> -> vector<8x128xf32>
    %c0_15 = arith.constant 0 : index
    %c0_16 = arith.constant 0 : index
    %31 = vector.load %arg6[%c0_15, %c0_16] : memref<1x128xf32, #tpu.memory_space<vmem>>, vector<1x128xf32>
    %32 = vector.broadcast %31 : vector<1x128xf32> to vector<8x128xf32>
    %33 = arith.addf %30, %32 : vector<8x128xf32>
    %c0_17 = arith.constant 0 : index
    %c0_18 = arith.constant 0 : index
    %34 = vector.load %arg7[%c0_17, %c0_18] : memref<8x128xf32, #tpu.memory_space<vmem>>, vector<8x128xf32>
    tpu.vector_store %arg7[%c0_17, %c0_18], %33 {strides = array<i32>} : memref<8x128xf32, #tpu.memory_space<vmem>>, vector<8x128xf32>,
    return
  }
  func.func @transform_0(%arg0: i32) -> (i32, i32) {
    %c0_i32 = arith.constant 0 : i32
    %c0_i32_0 = arith.constant 0 : i32
    return %arg0, %c0_i32 : i32, i32
  }
  func.func @transform_1(%arg0: i32) -> (i32, i32) {
    %c0_i32 = arith.constant 0 : i32
    %c0_i32_0 = arith.constant 0 : i32
    %c0_i32_1 = arith.constant 0 : i32
    return %c0_i32, %c0_i32_0 : i32, i32
  }
  func.func @transform_2(%arg0: i32) -> (i32, i32) {
    %c0_i32 = arith.constant 0 : i32
    %c0_i32_0 = arith.constant 0 : i32
    %c0_i32_1 = arith.constant 0 : i32
    return %c0_i32, %c0_i32_0 : i32, i32
  }
  func.func @transform_3(%arg0: i32) -> (i32, i32) {
    %c0_i32 = arith.constant 0 : i32
    %c0_i32_0 = arith.constant 0 : i32
    %c0_i32_1 = arith.constant 0 : i32
    return %c0_i32, %c0_i32_0 : i32, i32
  }
  func.func @transform_4(%arg0: i32) -> (i32, i32) {
    %c0_i32 = arith.constant 0 : i32
    %c0_i32_0 = arith.constant 0 : i32
    %c0_i32_1 = arith.constant 0 : i32
    return %c0_i32, %c0_i32_0 : i32, i32
  }
  func.func @transform_5(%arg0: i32) -> (i32, i32) {
    %c0_i32 = arith.constant 0 : i32
    %c0_i32_0 = arith.constant 0 : i32
    %c0_i32_1 = arith.constant 0 : i32
    return %c0_i32, %c0_i32_0 : i32, i32
  }
  func.func @transform_6(%arg0: i32) -> (i32, i32) {
    %c0_i32 = arith.constant 0 : i32
    %c0_i32_0 = arith.constant 0 : i32
    return %arg0, %c0_i32 : i32, i32
  }
}

</mosaic_0001>

<llo_original>
// kernel: tpu_custom_call.1
$region0: #{tpu_custom_call.1}
  #allocation0 [shape = 'u32[]', space=smem, size = 0x4, offset = 0x4, fixed_abs, tag = 'smem constant byte address 0x4 - core index']
  #allocation1 [shape = 'u32[72,128]{1,0:T(1,128)}', space=vmem, size = 0x9000, scoped, tag = 'internal scratch']
  %s0 = inlined_call_operand.vmem [shape: s32[256,1], index: 0, kind: input, shape index: {}]
  %s1 = inlined_call_operand.vmem [shape: bf16[128,32], index: 1, kind: input, shape index: {}]
  %s2 = inlined_call_operand.vmem [shape: bf16[128,64], index: 2, kind: input, shape index: {}]
  %s3 = inlined_call_operand.vmem [shape: f32[1,64], index: 3, kind: input, shape index: {}]
  %s4 = inlined_call_operand.vmem [shape: bf16[64,128], index: 4, kind: input, shape index: {}]
  %s5 = inlined_call_operand.vmem [shape: f32[1,128], index: 5, kind: input, shape index: {}]
  %s6 = inlined_call_operand.hbm [shape: f32[16,128], index: 6, kind: output, shape index: {}]
  %s7 = sld [smem:[#allocation0]]
  $region57: #{tpu_custom_call.1} parent=0
    _
  %s9 = ssub.s32 1, %s7
  %s10 = scalar_select 0, %s9, %s7
  $region1: #{tpu_custom_call.1} parent=0
    #allocation2 [shape = 'u8[8192]{0}', space=vmem, size = 0x2000, scoped, tag = 'output window, operand 0']
    #allocation3 [shape = 's32[2]{0}', space=sflag, size = 0x8, scoped, tag = 'scoped memory for tpu_custom_call.1']
    %11 = vsyncpa [#allocation3], 0
    %s12 = scalar_lea.sflag [#allocation3], 1
    %13 = vsyncpa %s12, 0
    loop: start=0, step=1, limit=4
    $region2: #{tpu_custom_call.1} parent=1 // loop_pre_header
      _
    $region3: #{tpu_custom_call.1} parent=1 // loop_header
      %s15 = sphi 0, %s19
      %p16 = scmp.ge.s32.totalorder %s15, 4
      %s25 = sphi 0, %s27
      %s28 = sphi 0, %s25
      %s29 = sphi 0, %s28
      %s45 = sphi 0, %s29
      %s49 = sphi 0, %s49
      %s51 = sphi 0, %s49
      %s52 = sphi 0, %s51
      %s66 = sphi 0, %s52
      %s70 = sphi 0, %s70
      %s72 = sphi 0, %s70
      %s73 = sphi 0, %s72
      %s87 = sphi 0, %s73
      %s91 = sphi 0, %s91
      %s93 = sphi 0, %s91
      %s94 = sphi 0, %s93
      %s108 = sphi 0, %s94
      %s112 = sphi 0, %s112
      %s114 = sphi 0, %s112
      %s115 = sphi 0, %s114
      %s129 = sphi 0, %s115
      %s133 = sphi 0, %s133
      %s135 = sphi 0, %s133
      %s136 = sphi 0, %s135
      %s150 = sphi 0, %s136
      %s156 = sphi 0, %s158
      %s159 = sphi 0, %s156
      %s160 = sphi 0, %s159
      %s176 = sphi 0, %s160
    $region4: #{tpu_custom_call.1} parent=1 // loop_header_branch
      %18 = sbr.rel (%p16) target = $region8
    $region5: #{tpu_custom_call.1} parent=1 // loop_body
      %s20 = ssub.s32 %s15, 1
      %s21 = ssub.s32 %s15, 2
      %s22 = sadd.s32 %s15, 1
      %s23 = ssub.s32 %s15, %s22
      %p24 = scmp.eq.s32.totalorder %s23, 0
      %s26 = sadd.s32 %s25, 1
      %s27 = scalar_select %p24, %s25, %s26
      %p30 = pneg %p24
      %p31 = scmp.eq.s32.totalorder %s15, 1
      %p32 = por %p30, %p31
      %p33 = scmp.ne.s32.totalorder %s25, %s28
      %p34 = scmp.eq.s32.totalorder %s15, 0
      %p35 = por %p33, %p34
      %p36 = scmp.ne.s32.totalorder %s25, %s28
      %p37 = scmp.eq.s32.totalorder %s20, 1
      %p38 = por %p36, %p37
      %p39 = scmp.ne.s32.totalorder %s28, %s29
      %p40 = scmp.eq.s32.totalorder %s20, 0
      %p41 = por %p39, %p40
      %p42 = scmp.ne.s32.totalorder %s28, %s29
      %p43 = scmp.eq.s32.totalorder %s21, 1
      %p44 = por %p42, %p43
      %p46 = scmp.ne.s32.totalorder %s29, %s45
      %p47 = scmp.eq.s32.totalorder %s21, 0
      %p48 = por %p46, %p47
      %s50 = sadd.s32 %s49, 1
      %p53 = scmp.eq.s32.totalorder %s15, 1
      %p54 = scmp.ne.s32.totalorder %s49, %s51
      %p55 = scmp.eq.s32.totalorder %s15, 0
      %p56 = por %p54, %p55
      %p57 = scmp.ne.s32.totalorder %s49, %s51
      %p58 = scmp.eq.s32.totalorder %s20, 1
      %p59 = por %p57, %p58
      %p60 = scmp.ne.s32.totalorder %s51, %s52
      %p61 = scmp.eq.s32.totalorder %s20, 0
      %p62 = por %p60, %p61
      %p63 = scmp.ne.s32.totalorder %s51, %s52
      %p64 = scmp.eq.s32.totalorder %s21, 1
      %p65 = por %p63, %p64
      %p67 = scmp.ne.s32.totalorder %s52, %s66
      %p68 = scmp.eq.s32.totalorder %s21, 0
      %p69 = por %p67, %p68
      %s71 = sadd.s32 %s70, 1
      %p74 = scmp.eq.s32.totalorder %s15, 1
      %p75 = scmp.ne.s32.totalorder %s70, %s72
      %p76 = scmp.eq.s32.totalorder %s15, 0
      %p77 = por %p75, %p76
      %p78 = scmp.ne.s32.totalorder %s70, %s72
      %p79 = scmp.eq.s32.totalorder %s20, 1
      %p80 = por %p78, %p79
      %p81 = scmp.ne.s32.totalorder %s72, %s73
      %p82 = scmp.eq.s32.totalorder %s20, 0
      %p83 = por %p81, %p82
      %p84 = scmp.ne.s32.totalorder %s72, %s73
      %p85 = scmp.eq.s32.totalorder %s21, 1
      %p86 = por %p84, %p85
      %p88 = scmp.ne.s32.totalorder %s73, %s87
      %p89 = scmp.eq.s32.totalorder %s21, 0
      %p90 = por %p88, %p89
      %s92 = sadd.s32 %s91, 1
      %p95 = scmp.eq.s32.totalorder %s15, 1
      %p96 = scmp.ne.s32.totalorder %s91, %s93
      %p97 = scmp.eq.s32.totalorder %s15, 0
      %p98 = por %p96, %p97
      %p99 = scmp.ne.s32.totalorder %s91, %s93
      %p100 = scmp.eq.s32.totalorder %s20, 1
      %p101 = por %p99, %p100
      %p102 = scmp.ne.s32.totalorder %s93, %s94
      %p103 = scmp.eq.s32.totalorder %s20, 0
      %p104 = por %p102, %p103
      %p105 = scmp.ne.s32.totalorder %s93, %s94
      %p106 = scmp.eq.s32.totalorder %s21, 1
      %p107 = por %p105, %p106
      %p109 = scmp.ne.s32.totalorder %s94, %s108
      %p110 = scmp.eq.s32.totalorder %s21, 0
      %p111 = por %p109, %p110
      %s113 = sadd.s32 %s112, 1
      %p116 = scmp.eq.s32.totalorder %s15, 1
      %p117 = scmp.ne.s32.totalorder %s112, %s114
      %p118 = scmp.eq.s32.totalorder %s15, 0
      %p119 = por %p117, %p118
      %p120 = scmp.ne.s32.totalorder %s112, %s114
      %p121 = scmp.eq.s32.totalorder %s20, 1
      %p122 = por %p120, %p121
      %p123 = scmp.ne.s32.totalorder %s114, %s115
      %p124 = scmp.eq.s32.totalorder %s20, 0
      %p125 = por %p123, %p124
      %p126 = scmp.ne.s32.totalorder %s114, %s115
      %p127 = scmp.eq.s32.totalorder %s21, 1
      %p128 = por %p126, %p127
      %p130 = scmp.ne.s32.totalorder %s115, %s129
      %p131 = scmp.eq.s32.totalorder %s21, 0
      %p132 = por %p130, %p131
      %s134 = sadd.s32 %s133, 1
      %p137 = scmp.eq.s32.totalorder %s15, 1
      %p138 = scmp.ne.s32.totalorder %s133, %s135
      %p139 = scmp.eq.s32.totalorder %s15, 0
      %p140 = por %p138, %p139
      %p141 = scmp.ne.s32.totalorder %s133, %s135
      %p142 = scmp.eq.s32.totalorder %s20, 1
      %p143 = por %p141, %p142
      %p144 = scmp.ne.s32.totalorder %s135, %s136
      %p145 = scmp.eq.s32.totalorder %s20, 0
      %p146 = por %p144, %p145
      %p147 = scmp.ne.s32.totalorder %s135, %s136
      %p148 = scmp.eq.s32.totalorder %s21, 1
      %p149 = por %p147, %p148
      %p151 = scmp.ne.s32.totalorder %s136, %s150
      %p152 = scmp.eq.s32.totalorder %s21, 0
      %p153 = por %p151, %p152
      %s154 = ssub.s32 %s15, %s22
      %p155 = scmp.eq.s32.totalorder %s154, 0
      %s157 = sadd.s32 %s156, 1
      %s158 = scalar_select %p155, %s156, %s157
      %p161 = pneg %p155
      %p162 = scmp.eq.s32.totalorder %s15, 1
      %p163 = por %p161, %p162
      %p164 = scmp.ne.s32.totalorder %s156, %s159
      %p165 = scmp.eq.s32.totalorder %s15, 0
      %p166 = por %p164, %p165
      %p167 = scmp.ne.s32.totalorder %s156, %s159
      %p168 = scmp.eq.s32.totalorder %s20, 1
      %p169 = por %p167, %p168
      %p170 = scmp.ne.s32.totalorder %s159, %s160
      %p171 = scmp.eq.s32.totalorder %s20, 0
      %p172 = por %p170, %p171
      %p173 = scmp.ne.s32.totalorder %s159, %s160
      %p174 = scmp.eq.s32.totalorder %s21, 1
      %p175 = por %p173, %p174
      %p177 = scmp.ne.s32.totalorder %s160, %s176
      %p178 = scmp.eq.s32.totalorder %s21, 0
      %p179 = por %p177, %p178
      %p180 = scmp.le.s32.totalorder 1, %s15
      %p181 = scmp.lt.s32.totalorder %s15, 3
      %p182 = pnand %p180, %p181
      %p183 = pneg %p182
      // Predicated region
      $region9: #{tpu_custom_call.1} parent=5 // pred_check
        _
      $region10: #{tpu_custom_call.1} parent=5 // pred_check_branch
        %185 = sbr.rel (%p182) target = $region12
      $region11: #{tpu_custom_call.1} parent=5 // pred_region
        %s186 = ssub.s32 %s15, 1
        // Predicated region
        $region13: #{tpu_custom_call.1} parent=11 // pred_check
          %p187 = pneg %p62
        $region14: #{tpu_custom_call.1} parent=11 // pred_check_branch
          %189 = sbr.rel (%p187) target = $region16
        $region15: #{tpu_custom_call.1} parent=11 // pred_region
          _
        $region16: #{tpu_custom_call.1} parent=11 // pred_fallthru
          _
        // Predicated region
        $region17: #{tpu_custom_call.1} parent=11 // pred_check
          %p190 = pneg %p83
        $region18: #{tpu_custom_call.1} parent=11 // pred_check_branch
          %192 = sbr.rel (%p190) target = $region20
        $region19: #{tpu_custom_call.1} parent=11 // pred_region
          _
        $region20: #{tpu_custom_call.1} parent=11 // pred_fallthru
          _
        // Predicated region
        $region21: #{tpu_custom_call.1} parent=11 // pred_check
          %p193 = pneg %p104
        $region22: #{tpu_custom_call.1} parent=11 // pred_check_branch
          %195 = sbr.rel (%p193) target = $region24
        $region23: #{tpu_custom_call.1} parent=11 // pred_region
          _
        $region24: #{tpu_custom_call.1} parent=11 // pred_fallthru
          _
        // Predicated region
        $region25: #{tpu_custom_call.1} parent=11 // pred_check
          %p196 = pneg %p125
        $region26: #{tpu_custom_call.1} parent=11 // pred_check_branch
          %198 = sbr.rel (%p196) target = $region28
        $region27: #{tpu_custom_call.1} parent=11 // pred_region
          _
        $region28: #{tpu_custom_call.1} parent=11 // pred_fallthru
          _
        // Predicated region
        $region29: #{tpu_custom_call.1} parent=11 // pred_check
          %p199 = pneg %p146
        $region30: #{tpu_custom_call.1} parent=11 // pred_check_branch
          %201 = sbr.rel (%p199) target = $region32
        $region31: #{tpu_custom_call.1} parent=11 // pred_region
          _
        $region32: #{tpu_custom_call.1} parent=11 // pred_fallthru
          _
      $region12: #{tpu_custom_call.1} parent=5 // pred_fallthru
        _
      %p202 = scmp.lt.s32.totalorder %s15, 2
      // Predicated region
      $region33: #{tpu_custom_call.1} parent=5 // pred_check
        %p203 = pneg %p202
      $region34: #{tpu_custom_call.1} parent=5 // pred_check_branch
        %205 = sbr.rel (%p203) target = $region36
      $region35: #{tpu_custom_call.1} parent=5 // pred_region
        // Predicated region
        $region37: #{tpu_custom_call.1} parent=35 // pred_check
          %p206 = pneg %p35
        $region38: #{tpu_custom_call.1} parent=35 // pred_check_branch
          %208 = sbr.rel (%p206) target = $region40
        $region39: #{tpu_custom_call.1} parent=35 // pred_region
          %s209 = smul.u32 16, %s15
          %p210 = scmp.lt.s32.totalorder %s209, 31
          %s211 = scalar_select %p210, %s209, 31
          %s212 = smul.addr %s211, 8
          %s213 = scalar_lea.vmem %s0, %s212
          %s214 = smul.u32 16, %s15
        $region40: #{tpu_custom_call.1} parent=35 // pred_fallthru
          _
      $region36: #{tpu_custom_call.1} parent=5 // pred_fallthru
        _
      %p215 = scmp.le.s32.totalorder 1, %s15
      %p216 = scmp.lt.s32.totalorder %s15, 3
      %p217 = pnand %p215, %p216
      %p218 = pneg %p217
      // Predicated region
      $region41: #{tpu_custom_call.1} parent=5 // pred_check
        _
      $region42: #{tpu_custom_call.1} parent=5 // pred_check_branch
        %220 = sbr.rel (%p217) target = $region44
      $region43: #{tpu_custom_call.1} parent=5 // pred_region
        %s221 = ssub.s32 %s15, 1
        %s222 = smul.u32 16, %s20
        %p223 = scmp.lt.s32.totalorder %s222, 31
        %s224 = scalar_select %p223, %s222, 31
        %s225 = smul.addr %s224, 8
        %s226 = scalar_lea.vmem %s0, %s225
        %p227 = pneg %p41
        %p228 = pneg %p38
        %p229 = pneg %p62
        %p230 = pneg %p59
        %p231 = pneg %p83
        %p232 = pneg %p80
        %p233 = pneg %p104
        %p234 = pneg %p101
        %p235 = pneg %p125
        %p236 = pneg %p122
        %p237 = pneg %p146
        %p238 = pneg %p143
        %p239 = pneg %p172
        %p240 = pneg %p169
        %s241 = sand.u32 %s159, 1
        %s242 = scalar_lea.sflag [#allocation3], %s241
        %s243 = sand.u32 %s159, 1
        %s244 = smul.addr %s243, 8
        %s245 = scalar_lea.vmem [#allocation2], %s244
        %s246 = smul.u32 16, %s20
        %p247 = scmp.lt.s32.totalorder %s246, 31
        %s248 = scalar_select %p247, %s246, 31
        %s249 = smul.addr %s248, 8
        %s250 = scalar_lea.vmem %s0, %s249
        %s251 = smul.u32 16, %s20
        %v253 = vld [vmem:[%s250] sm:$0xff]
        %v254 = vld [vmem:[%s250 + $0x8] sm:$0xff]
        %v255 = vld [vmem:[%s250 + $0x10] sm:$0xff]
        %v256 = vld [vmem:[%s250 + $0x18] sm:$0xff]
        %v257 = vld [vmem:[%s250 + $0x20] sm:$0xff]
        %v258 = vld [vmem:[%s250 + $0x28] sm:$0xff]
        %v259 = vld [vmem:[%s250 + $0x30] sm:$0xff]
        %v260 = vld [vmem:[%s250 + $0x38] sm:$0xff]
        %v261 = vld [vmem:[%s250 + $0x40] sm:$0xff]
        %v262 = vld [vmem:[%s250 + $0x48] sm:$0xff]
        %v263 = vld [vmem:[%s250 + $0x50] sm:$0xff]
        %v264 = vld [vmem:[%s250 + $0x58] sm:$0xff]
        %v265 = vld [vmem:[%s250 + $0x60] sm:$0xff]
        %v266 = vld [vmem:[%s250 + $0x68] sm:$0xff]
        %v267 = vld [vmem:[%s250 + $0x70] sm:$0xff]
        %v268 = vld [vmem:[%s250 + $0x78] sm:$0xff]
        %v269 = vlaneseq
        %v270 = vand.u32 %v269, 127
        %271 = vset.pattern.permute.xlu0 0
        %272 = vperm.xlu0 %271, %v253
        %v273 = vpop.permute.xlu0 %272
        %274 = vset.pattern.permute.xlu0 0
        %275 = vperm.xlu0 %274, %v254
        %v276 = vpop.permute.xlu0 %275
        %277 = vset.pattern.permute.xlu0 0
        %278 = vperm.xlu0 %277, %v255
        %v279 = vpop.permute.xlu0 %278
        %280 = vset.pattern.permute.xlu0 0
        %281 = vperm.xlu0 %280, %v256
        %v282 = vpop.permute.xlu0 %281
        %283 = vset.pattern.permute.xlu0 0
        %284 = vperm.xlu0 %283, %v257
        %v285 = vpop.permute.xlu0 %284
        %286 = vset.pattern.permute.xlu0 0
        %287 = vperm.xlu0 %286, %v258
        %v288 = vpop.permute.xlu0 %287
        %289 = vset.pattern.permute.xlu0 0
        %290 = vperm.xlu0 %289, %v259
        %v291 = vpop.permute.xlu0 %290
        %292 = vset.pattern.permute.xlu0 0
        %293 = vperm.xlu0 %292, %v260
        %v294 = vpop.permute.xlu0 %293
        %295 = vset.pattern.permute.xlu0 0
        %296 = vperm.xlu0 %295, %v261
        %v297 = vpop.permute.xlu0 %296
        %298 = vset.pattern.permute.xlu0 0
        %299 = vperm.xlu0 %298, %v262
        %v300 = vpop.permute.xlu0 %299
        %301 = vset.pattern.permute.xlu0 0
        %302 = vperm.xlu0 %301, %v263
        %v303 = vpop.permute.xlu0 %302
        %304 = vset.pattern.permute.xlu0 0
        %305 = vperm.xlu0 %304, %v264
        %v306 = vpop.permute.xlu0 %305
        %307 = vset.pattern.permute.xlu0 0
        %308 = vperm.xlu0 %307, %v265
        %v309 = vpop.permute.xlu0 %308
        %310 = vset.pattern.permute.xlu0 0
        %311 = vperm.xlu0 %310, %v266
        %v312 = vpop.permute.xlu0 %311
        %313 = vset.pattern.permute.xlu0 0
        %314 = vperm.xlu0 %313, %v267
        %v315 = vpop.permute.xlu0 %314
        %316 = vset.pattern.permute.xlu0 0
        %317 = vperm.xlu0 %316, %v268
        %v318 = vpop.permute.xlu0 %317
        %vm319 = vcmp.eq.s32.totalorder %v270, %v273
        %vm320 = vcmp.eq.s32.totalorder %v270, %v276
        %vm321 = vcmp.eq.s32.totalorder %v270, %v279
        %vm322 = vcmp.eq.s32.totalorder %v270, %v282
        %vm323 = vcmp.eq.s32.totalorder %v270, %v285
        %vm324 = vcmp.eq.s32.totalorder %v270, %v288
        %vm325 = vcmp.eq.s32.totalorder %v270, %v291
        %vm326 = vcmp.eq.s32.totalorder %v270, %v294
        %vm327 = vcmp.eq.s32.totalorder %v270, %v297
        %vm328 = vcmp.eq.s32.totalorder %v270, %v300
        %vm329 = vcmp.eq.s32.totalorder %v270, %v303
        %vm330 = vcmp.eq.s32.totalorder %v270, %v306
        %vm331 = vcmp.eq.s32.totalorder %v270, %v309
        %vm332 = vcmp.eq.s32.totalorder %v270, %v312
        %vm333 = vcmp.eq.s32.totalorder %v270, %v315
        %vm334 = vcmp.eq.s32.totalorder %v270, %v318
        %v335 = vsel %vm319, 1, 0
        %v336 = vsel %vm320, 1, 0
        %v337 = vsel %vm321, 1, 0
        %v338 = vsel %vm322, 1, 0
        %v339 = vsel %vm323, 1, 0
        %v340 = vsel %vm324, 1, 0
        %v341 = vsel %vm325, 1, 0
        %v342 = vsel %vm326, 1, 0
        %v343 = vsel %vm327, 1, 0
        %v344 = vsel %vm328, 1, 0
        %v345 = vsel %vm329, 1, 0
        %v346 = vsel %vm330, 1, 0
        %v347 = vsel %vm331, 1, 0
        %v348 = vsel %vm332, 1, 0
        %v349 = vsel %vm333, 1, 0
        %v350 = vsel %vm334, 1, 0
        %v351 = vcvt.s32.f32 %v335
        %v352 = vcvt.s32.f32 %v336
        %v353 = vcvt.s32.f32 %v337
        %v354 = vcvt.s32.f32 %v338
        %v355 = vcvt.s32.f32 %v339
        %v356 = vcvt.s32.f32 %v340
        %v357 = vcvt.s32.f32 %v341
        %v358 = vcvt.s32.f32 %v342
        %v359 = vcvt.s32.f32 %v343
        %v360 = vcvt.s32.f32 %v344
        %v361 = vcvt.s32.f32 %v345
        %v362 = vcvt.s32.f32 %v346
        %v363 = vcvt.s32.f32 %v347
        %v364 = vcvt.s32.f32 %v348
        %v365 = vcvt.s32.f32 %v349
        %v366 = vcvt.s32.f32 %v350
        %v367 = vpack.c.bf16 %v352, %v351
        %v368 = vpack.c.bf16 %v354, %v353
        %v369 = vpack.c.bf16 %v356, %v355
        %v370 = vpack.c.bf16 %v358, %v357
        %v371 = vpack.c.bf16 %v360, %v359
        %v372 = vpack.c.bf16 %v362, %v361
        %v373 = vpack.c.bf16 %v364, %v363
        %v374 = vpack.c.bf16 %v366, %v365
        %v375 = vld [vmem:[%s1] sm:$0xf]
        %v376 = vld [vmem:[%s1 + $0x4] sm:$0xf]
        %v377 = vld [vmem:[%s1 + $0x8] sm:$0xf]
        %v378 = vld [vmem:[%s1 + $0xc] sm:$0xf]
        %v379 = vld [vmem:[%s1 + $0x10] sm:$0xf]
        %v380 = vld [vmem:[%s1 + $0x14] sm:$0xf]
        %v381 = vld [vmem:[%s1 + $0x18] sm:$0xf]
        %v382 = vld [vmem:[%s1 + $0x1c] sm:$0xf]
        %v383 = vld [vmem:[%s1 + $0x20] sm:$0xf]
        %v384 = vld [vmem:[%s1 + $0x24] sm:$0xf]
        %v385 = vld [vmem:[%s1 + $0x28] sm:$0xf]
        %v386 = vld [vmem:[%s1 + $0x2c] sm:$0xf]
        %v387 = vld [vmem:[%s1 + $0x30] sm:$0xf]
        %v388 = vld [vmem:[%s1 + $0x34] sm:$0xf]
        %v389 = vld [vmem:[%s1 + $0x38] sm:$0xf]
        %v390 = vld [vmem:[%s1 + $0x3c] sm:$0xf]
        %v407 = vunpack.c.l.b16 %v375
        %v408 = vunpack.c.l.b16 %v376
        %v409 = vunpack.c.l.b16 %v377
        %v410 = vunpack.c.l.b16 %v378
        %v411 = vunpack.c.l.b16 %v379
        %v412 = vunpack.c.l.b16 %v380
        %v413 = vunpack.c.l.b16 %v381
        %v414 = vunpack.c.l.b16 %v382
        %v415 = vunpack.c.l.b16 %v383
        %v416 = vunpack.c.l.b16 %v384
        %v417 = vunpack.c.l.b16 %v385
        %v418 = vunpack.c.l.b16 %v386
        %v419 = vunpack.c.l.b16 %v387
        %v420 = vunpack.c.l.b16 %v388
        %v421 = vunpack.c.l.b16 %v389
        %v422 = vunpack.c.l.b16 %v390
        %v423 = vpack.c.b16 %v408, %v407
        %v424 = vpack.c.b16 %v410, %v409
        %v425 = vpack.c.b16 %v412, %v411
        %v426 = vpack.c.b16 %v414, %v413
        %v427 = vpack.c.b16 %v416, %v415
        %v428 = vpack.c.b16 %v418, %v417
        %v429 = vpack.c.b16 %v420, %v419
        %v430 = vpack.c.b16 %v422, %v421
        %439 = vmatpush.bf16.msra.mxu0 %v430
        %440 = vmatpush.bf16.msra.mxu0 %v429
        %441 = vmatpush.bf16.msra.mxu0 %v428
        %442 = vmatpush.bf16.msra.mxu0 %v427
        %443 = vmatpush.bf16.msra.mxu0 %v426
        %444 = vmatpush.bf16.msra.mxu0 %v425
        %445 = vmatpush.bf16.msra.mxu0 %v424
        %446 = vmatpush.bf16.msra.mxu0 %v423
        %447 = vmatmul.bf16.gmra.mxu0 %v367
        %v448 = vpop.f32.mrf.mxu0
        %v449 = vadd.f32 0.0, %v448
        %v450 = vpop.f32.mrf.mxu0
        %v451 = vadd.f32 0.0, %v450
        %452 = vmatmul.bf16.gmra.mxu0 %v368
        %v453 = vpop.f32.mrf.mxu0
        %v454 = vadd.f32 0.0, %v453
        %v455 = vpop.f32.mrf.mxu0
        %v456 = vadd.f32 0.0, %v455
        %457 = vmatmul.bf16.gmra.mxu0 %v369
        %v458 = vpop.f32.mrf.mxu0
        %v459 = vadd.f32 0.0, %v458
        %v460 = vpop.f32.mrf.mxu0
        %v461 = vadd.f32 0.0, %v460
        %462 = vmatmul.bf16.gmra.mxu0 %v370
        %v463 = vpop.f32.mrf.mxu0
        %v464 = vadd.f32 0.0, %v463
        %v465 = vpop.f32.mrf.mxu0
        %v466 = vadd.f32 0.0, %v465
        %467 = vmatmul.bf16.gmra.mxu0 %v371
        %v468 = vpop.f32.mrf.mxu0
        %v469 = vadd.f32 0.0, %v468
        %v470 = vpop.f32.mrf.mxu0
        %v471 = vadd.f32 0.0, %v470
        %472 = vmatmul.bf16.gmra.mxu0 %v372
        %v473 = vpop.f32.mrf.mxu0
        %v474 = vadd.f32 0.0, %v473
        %v475 = vpop.f32.mrf.mxu0
        %v476 = vadd.f32 0.0, %v475
        %477 = vmatmul.bf16.gmra.mxu0 %v373
        %v478 = vpop.f32.mrf.mxu0
        %v479 = vadd.f32 0.0, %v478
        %v480 = vpop.f32.mrf.mxu0
        %v481 = vadd.f32 0.0, %v480
        %482 = vmatmul.bf16.gmra.mxu0 %v374
        %v483 = vpop.f32.mrf.mxu0
        %v484 = vadd.f32 0.0, %v483
        %v485 = vpop.f32.mrf.mxu0
        %v486 = vadd.f32 0.0, %v485
        %487 = vdwg.mxu0
        %v488 = vrot.slane %v449, 1
        %v489 = vrot.slane %v451, 1
        %v490 = vrot.slane %v454, 1
        %v491 = vrot.slane %v456, 1
        %v492 = vrot.slane %v459, 1
        %v493 = vrot.slane %v461, 1
        %v494 = vrot.slane %v464, 1
        %v495 = vrot.slane %v466, 1
        %v496 = vrot.slane %v469, 1
        %v497 = vrot.slane %v471, 1
        %v498 = vrot.slane %v474, 1
        %v499 = vrot.slane %v476, 1
        %v500 = vrot.slane %v479, 1
        %v501 = vrot.slane %v481, 1
        %v502 = vrot.slane %v484, 1
        %v503 = vrot.slane %v486, 1
        %v504 = vlaneseq
        %v505 = vshrl.u32 %v504, 7
        %vm506 = vcmp.lt.s32.totalorder %v505, 7
        %v507 = vsel %vm506, %v502, %v503
        %v508 = vsel %vm506, %v501, %v502
        %v509 = vsel %vm506, %v500, %v501
        %v510 = vsel %vm506, %v499, %v500
        %v511 = vsel %vm506, %v498, %v499
        %v512 = vsel %vm506, %v497, %v498
        %v513 = vsel %vm506, %v496, %v497
        %v514 = vsel %vm506, %v495, %v496
        %v515 = vsel %vm506, %v494, %v495
        %v516 = vsel %vm506, %v493, %v494
        %v517 = vsel %vm506, %v492, %v493
        %v518 = vsel %vm506, %v491, %v492
        %v519 = vsel %vm506, %v490, %v491
        %v520 = vsel %vm506, %v489, %v490
        %v521 = vsel %vm506, %v488, %v489
        %v522 = vsel %vm506, %v503, %v488
        %v523 = vrot.slane %v449, 2
        %v524 = vrot.slane %v451, 2
        %v525 = vrot.slane %v454, 2
        %v526 = vrot.slane %v456, 2
        %v527 = vrot.slane %v459, 2
        %v528 = vrot.slane %v461, 2
        %v529 = vrot.slane %v464, 2
        %v530 = vrot.slane %v466, 2
        %v531 = vrot.slane %v469, 2
        %v532 = vrot.slane %v471, 2
        %v533 = vrot.slane %v474, 2
        %v534 = vrot.slane %v476, 2
        %v535 = vrot.slane %v479, 2
        %v536 = vrot.slane %v481, 2
        %v537 = vrot.slane %v484, 2
        %v538 = vrot.slane %v486, 2
        %vm539 = vcmp.lt.s32.totalorder %v505, 6
        %v540 = vsel %vm539, %v537, %v538
        %v541 = vsel %vm539, %v536, %v537
        %v542 = vsel %vm539, %v535, %v536
        %v543 = vsel %vm539, %v534, %v535
        %v544 = vsel %vm539, %v533, %v534
        %v545 = vsel %vm539, %v532, %v533
        %v546 = vsel %vm539, %v531, %v532
        %v547 = vsel %vm539, %v530, %v531
        %v548 = vsel %vm539, %v529, %v530
        %v549 = vsel %vm539, %v528, %v529
        %v550 = vsel %vm539, %v527, %v528
        %v551 = vsel %vm539, %v526, %v527
        %v552 = vsel %vm539, %v525, %v526
        %v553 = vsel %vm539, %v524, %v525
        %v554 = vsel %vm539, %v523, %v524
        %v555 = vsel %vm539, %v538, %v523
        %572 = vrot.lane.b32.xlu0 %v521, 32
        %v573 = vpop.permute.xlu0 %572
        %574 = vrot.lane.b32.xlu0 %v520, 32
        %v575 = vpop.permute.xlu0 %574
        %576 = vrot.lane.b32.xlu0 %v519, 32
        %v577 = vpop.permute.xlu0 %576
        %578 = vrot.lane.b32.xlu0 %v518, 32
        %v579 = vpop.permute.xlu0 %578
        %580 = vrot.lane.b32.xlu0 %v517, 32
        %v581 = vpop.permute.xlu0 %580
        %582 = vrot.lane.b32.xlu0 %v516, 32
        %v583 = vpop.permute.xlu0 %582
        %584 = vrot.lane.b32.xlu0 %v515, 32
        %v585 = vpop.permute.xlu0 %584
        %586 = vrot.lane.b32.xlu0 %v514, 32
        %v587 = vpop.permute.xlu0 %586
        %588 = vrot.lane.b32.xlu0 %v513, 32
        %v589 = vpop.permute.xlu0 %588
        %590 = vrot.lane.b32.xlu0 %v512, 32
        %v591 = vpop.permute.xlu0 %590
        %592 = vrot.lane.b32.xlu0 %v511, 32
        %v593 = vpop.permute.xlu0 %592
        %594 = vrot.lane.b32.xlu0 %v510, 32
        %v595 = vpop.permute.xlu0 %594
        %596 = vrot.lane.b32.xlu0 %v509, 32
        %v597 = vpop.permute.xlu0 %596
        %598 = vrot.lane.b32.xlu0 %v508, 32
        %v599 = vpop.permute.xlu0 %598
        %600 = vrot.lane.b32.xlu0 %v507, 32
        %v601 = vpop.permute.xlu0 %600
        %602 = vrot.lane.b32.xlu0 %v522, 32
        %v603 = vpop.permute.xlu0 %602
        %636 = vrot.lane.b32.xlu0 %v554, 64
        %v637 = vpop.permute.xlu0 %636
        %638 = vrot.lane.b32.xlu0 %v553, 64
        %v639 = vpop.permute.xlu0 %638
        %640 = vrot.lane.b32.xlu0 %v552, 64
        %v641 = vpop.permute.xlu0 %640
        %642 = vrot.lane.b32.xlu0 %v551, 64
        %v643 = vpop.permute.xlu0 %642
        %644 = vrot.lane.b32.xlu0 %v550, 64
        %v645 = vpop.permute.xlu0 %644
        %646 = vrot.lane.b32.xlu0 %v549, 64
        %v647 = vpop.permute.xlu0 %646
        %648 = vrot.lane.b32.xlu0 %v548, 64
        %v649 = vpop.permute.xlu0 %648
        %650 = vrot.lane.b32.xlu0 %v547, 64
        %v651 = vpop.permute.xlu0 %650
        %652 = vrot.lane.b32.xlu0 %v546, 64
        %v653 = vpop.permute.xlu0 %652
        %654 = vrot.lane.b32.xlu0 %v545, 64
        %v655 = vpop.permute.xlu0 %654
        %656 = vrot.lane.b32.xlu0 %v544, 64
        %v657 = vpop.permute.xlu0 %656
        %658 = vrot.lane.b32.xlu0 %v543, 64
        %v659 = vpop.permute.xlu0 %658
        %660 = vrot.lane.b32.xlu0 %v542, 64
        %v661 = vpop.permute.xlu0 %660
        %662 = vrot.lane.b32.xlu0 %v541, 64
        %v663 = vpop.permute.xlu0 %662
        %664 = vrot.lane.b32.xlu0 %v540, 64
        %v665 = vpop.permute.xlu0 %664
        %666 = vrot.lane.b32.xlu0 %v555, 64
        %v667 = vpop.permute.xlu0 %666
        %vm684 = vcmask 261120
        %v685 = vsel %vm684, %v449, %v573
        %v686 = vsel %vm684, %v451, %v575
        %v687 = vsel %vm684, %v454, %v577
        %v688 = vsel %vm684, %v456, %v579
        %v689 = vsel %vm684, %v459, %v581
        %v690 = vsel %vm684, %v461, %v583
        %v691 = vsel %vm684, %v464, %v585
        %v692 = vsel %vm684, %v466, %v587
        %v693 = vsel %vm684, %v469, %v589
        %v694 = vsel %vm684, %v471, %v591
        %v695 = vsel %vm684, %v474, %v593
        %v696 = vsel %vm684, %v476, %v595
        %v697 = vsel %vm684, %v479, %v597
        %v698 = vsel %vm684, %v481, %v599
        %v699 = vsel %vm684, %v484, %v601
        %v700 = vsel %vm684, %v486, %v603
        %vm701 = vcmask 523264
        %v702 = vsel %vm701, %v685, %v637
        %v703 = vsel %vm701, %v686, %v639
        %v704 = vsel %vm701, %v687, %v641
        %v705 = vsel %vm701, %v688, %v643
        %v706 = vsel %vm701, %v689, %v645
        %v707 = vsel %vm701, %v690, %v647
        %v708 = vsel %vm701, %v691, %v649
        %v709 = vsel %vm701, %v692, %v651
        %v710 = vsel %vm701, %v693, %v653
        %v711 = vsel %vm701, %v694, %v655
        %v712 = vsel %vm701, %v695, %v657
        %v713 = vsel %vm701, %v696, %v659
        %v714 = vsel %vm701, %v697, %v661
        %v715 = vsel %vm701, %v698, %v663
        %v716 = vsel %vm701, %v699, %v665
        %v717 = vsel %vm701, %v700, %v667
        %vm718 = vcmask 785408
        %v719 = vsel %vm718, %v702, 0.0
        %v720 = vsel %vm718, %v703, 0.0
        %v721 = vsel %vm718, %v704, 0.0
        %v722 = vsel %vm718, %v705, 0.0
        %v723 = vsel %vm718, %v706, 0.0
        %v724 = vsel %vm718, %v707, 0.0
        %v725 = vsel %vm718, %v708, 0.0
        %v726 = vsel %vm718, %v709, 0.0
        %v727 = vsel %vm718, %v710, 0.0
        %v728 = vsel %vm718, %v711, 0.0
        %v729 = vsel %vm718, %v712, 0.0
        %v730 = vsel %vm718, %v713, 0.0
        %v731 = vsel %vm718, %v714, 0.0
        %v732 = vsel %vm718, %v715, 0.0
        %v733 = vsel %vm718, %v716, 0.0
        %v734 = vsel %vm718, %v717, 0.0
        %v735 = vpack.c.bf16 %v720, %v719
        %v736 = vpack.c.bf16 %v722, %v721
        %v737 = vpack.c.bf16 %v724, %v723
        %v738 = vpack.c.bf16 %v726, %v725
        %v739 = vpack.c.bf16 %v728, %v727
        %v740 = vpack.c.bf16 %v730, %v729
        %v741 = vpack.c.bf16 %v732, %v731
        %v742 = vpack.c.bf16 %v734, %v733
        %v743 = vld [vmem:[%s2] sm:$0xf]
        %v744 = vld [vmem:[%s2 + $0x4] sm:$0xf]
        %v745 = vld [vmem:[%s2 + $0x8] sm:$0xf]
        %v746 = vld [vmem:[%s2 + $0xc] sm:$0xf]
        %v747 = vld [vmem:[%s2 + $0x10] sm:$0xf]
        %v748 = vld [vmem:[%s2 + $0x14] sm:$0xf]
        %v749 = vld [vmem:[%s2 + $0x18] sm:$0xf]
        %v750 = vld [vmem:[%s2 + $0x1c] sm:$0xf]
        %v751 = vld [vmem:[%s2 + $0x20] sm:$0xf]
        %v752 = vld [vmem:[%s2 + $0x24] sm:$0xf]
        %v753 = vld [vmem:[%s2 + $0x28] sm:$0xf]
        %v754 = vld [vmem:[%s2 + $0x2c] sm:$0xf]
        %v755 = vld [vmem:[%s2 + $0x30] sm:$0xf]
        %v756 = vld [vmem:[%s2 + $0x34] sm:$0xf]
        %v757 = vld [vmem:[%s2 + $0x38] sm:$0xf]
        %v758 = vld [vmem:[%s2 + $0x3c] sm:$0xf]
        %v775 = vunpack.c.l.b16 %v743
        %v776 = vunpack.c.l.b16 %v744
        %v777 = vunpack.c.l.b16 %v745
        %v778 = vunpack.c.l.b16 %v746
        %v779 = vunpack.c.l.b16 %v747
        %v780 = vunpack.c.l.b16 %v748
        %v781 = vunpack.c.l.b16 %v749
        %v782 = vunpack.c.l.b16 %v750
        %v783 = vunpack.c.l.b16 %v751
        %v784 = vunpack.c.l.b16 %v752
        %v785 = vunpack.c.l.b16 %v753
        %v786 = vunpack.c.l.b16 %v754
        %v787 = vunpack.c.l.b16 %v755
        %v788 = vunpack.c.l.b16 %v756
        %v789 = vunpack.c.l.b16 %v757
        %v790 = vunpack.c.l.b16 %v758
        %v791 = vpack.c.b16 %v776, %v775
        %v792 = vpack.c.b16 %v778, %v777
        %v793 = vpack.c.b16 %v780, %v779
        %v794 = vpack.c.b16 %v782, %v781
        %v795 = vpack.c.b16 %v784, %v783
        %v796 = vpack.c.b16 %v786, %v785
        %v797 = vpack.c.b16 %v788, %v787
        %v798 = vpack.c.b16 %v790, %v789
        %807 = vmatpush.bf16.msra.mxu0 %v798
        %808 = vmatpush.bf16.msra.mxu0 %v797
        %809 = vmatpush.bf16.msra.mxu0 %v796
        %810 = vmatpush.bf16.msra.mxu0 %v795
        %811 = vmatpush.bf16.msra.mxu0 %v794
        %812 = vmatpush.bf16.msra.mxu0 %v793
        %813 = vmatpush.bf16.msra.mxu0 %v792
        %814 = vmatpush.bf16.msra.mxu0 %v791
        %815 = vmatmul.bf16.gmra.mxu0 %v735
        %v816 = vpop.f32.mrf.mxu0
        %v817 = vadd.f32 0.0, %v816
        %v818 = vpop.f32.mrf.mxu0
        %v819 = vadd.f32 0.0, %v818
        %820 = vmatmul.bf16.gmra.mxu0 %v736
        %v821 = vpop.f32.mrf.mxu0
        %v822 = vadd.f32 0.0, %v821
        %v823 = vpop.f32.mrf.mxu0
        %v824 = vadd.f32 0.0, %v823
        %825 = vmatmul.bf16.gmra.mxu0 %v737
        %v826 = vpop.f32.mrf.mxu0
        %v827 = vadd.f32 0.0, %v826
        %v828 = vpop.f32.mrf.mxu0
        %v829 = vadd.f32 0.0, %v828
        %830 = vmatmul.bf16.gmra.mxu0 %v738
        %v831 = vpop.f32.mrf.mxu0
        %v832 = vadd.f32 0.0, %v831
        %v833 = vpop.f32.mrf.mxu0
        %v834 = vadd.f32 0.0, %v833
        %835 = vmatmul.bf16.gmra.mxu0 %v739
        %v836 = vpop.f32.mrf.mxu0
        %v837 = vadd.f32 0.0, %v836
        %v838 = vpop.f32.mrf.mxu0
        %v839 = vadd.f32 0.0, %v838
        %840 = vmatmul.bf16.gmra.mxu0 %v740
        %v841 = vpop.f32.mrf.mxu0
        %v842 = vadd.f32 0.0, %v841
        %v843 = vpop.f32.mrf.mxu0
        %v844 = vadd.f32 0.0, %v843
        %845 = vmatmul.bf16.gmra.mxu0 %v741
        %v846 = vpop.f32.mrf.mxu0
        %v847 = vadd.f32 0.0, %v846
        %v848 = vpop.f32.mrf.mxu0
        %v849 = vadd.f32 0.0, %v848
        %850 = vmatmul.bf16.gmra.mxu0 %v742
        %v851 = vpop.f32.mrf.mxu0
        %v852 = vadd.f32 0.0, %v851
        %v853 = vpop.f32.mrf.mxu0
        %v854 = vadd.f32 0.0, %v853
        %855 = vdwg.mxu0
        %v856 = vadd.s32 %v505, 8
        %vm857 = vcmp.lt.s32.totalorder %v505, 14
        %vm858 = vcmp.lt.s32.totalorder %v856, 14
        %v859 = vsel %vm857, %v817, -inf
        %v860 = vsel %vm858, %v819, -inf
        %v861 = vsel %vm857, %v822, -inf
        %v862 = vsel %vm858, %v824, -inf
        %v863 = vsel %vm857, %v827, -inf
        %v864 = vsel %vm858, %v829, -inf
        %v865 = vsel %vm857, %v832, -inf
        %v866 = vsel %vm858, %v834, -inf
        %v867 = vsel %vm857, %v837, -inf
        %v868 = vsel %vm858, %v839, -inf
        %v869 = vsel %vm857, %v842, -inf
        %v870 = vsel %vm858, %v844, -inf
        %v871 = vsel %vm857, %v847, -inf
        %v872 = vsel %vm858, %v849, -inf
        %v873 = vsel %vm857, %v852, -inf
        %v874 = vsel %vm858, %v854, -inf
        %v875 = vsel %vm701, %v859, -inf
        %v876 = vsel %vm701, %v860, -inf
        %v877 = vmax.f32 %v875, %v876
        %v878 = vrot.slane %v877, 4
        %v879 = vmax.f32 %v877, %v878
        %v880 = vrot.slane %v879, 2
        %v881 = vmax.f32 %v879, %v880
        %v882 = vrot.slane %v881, 1
        %v883 = vmax.f32 %v881, %v882
        %v884 = vsel %vm701, %v861, -inf
        %v885 = vsel %vm701, %v862, -inf
        %v886 = vmax.f32 %v884, %v885
        %v887 = vrot.slane %v886, 4
        %v888 = vmax.f32 %v886, %v887
        %v889 = vrot.slane %v888, 2
        %v890 = vmax.f32 %v888, %v889
        %v891 = vrot.slane %v890, 1
        %v892 = vmax.f32 %v890, %v891
        %v893 = vsel %vm701, %v863, -inf
        %v894 = vsel %vm701, %v864, -inf
        %v895 = vmax.f32 %v893, %v894
        %v896 = vrot.slane %v895, 4
        %v897 = vmax.f32 %v895, %v896
        %v898 = vrot.slane %v897, 2
        %v899 = vmax.f32 %v897, %v898
        %v900 = vrot.slane %v899, 1
        %v901 = vmax.f32 %v899, %v900
        %v902 = vsel %vm701, %v865, -inf
        %v903 = vsel %vm701, %v866, -inf
        %v904 = vmax.f32 %v902, %v903
        %v905 = vrot.slane %v904, 4
        %v906 = vmax.f32 %v904, %v905
        %v907 = vrot.slane %v906, 2
        %v908 = vmax.f32 %v906, %v907
        %v909 = vrot.slane %v908, 1
        %v910 = vmax.f32 %v908, %v909
        %v911 = vsel %vm701, %v867, -inf
        %v912 = vsel %vm701, %v868, -inf
        %v913 = vmax.f32 %v911, %v912
        %v914 = vrot.slane %v913, 4
        %v915 = vmax.f32 %v913, %v914
        %v916 = vrot.slane %v915, 2
        %v917 = vmax.f32 %v915, %v916
        %v918 = vrot.slane %v917, 1
        %v919 = vmax.f32 %v917, %v918
        %v920 = vsel %vm701, %v869, -inf
        %v921 = vsel %vm701, %v870, -inf
        %v922 = vmax.f32 %v920, %v921
        %v923 = vrot.slane %v922, 4
        %v924 = vmax.f32 %v922, %v923
        %v925 = vrot.slane %v924, 2
        %v926 = vmax.f32 %v924, %v925
        %v927 = vrot.slane %v926, 1
        %v928 = vmax.f32 %v926, %v927
        %v929 = vsel %vm701, %v871, -inf
        %v930 = vsel %vm701, %v872, -inf
        %v931 = vmax.f32 %v929, %v930
        %v932 = vrot.slane %v931, 4
        %v933 = vmax.f32 %v931, %v932
        %v934 = vrot.slane %v933, 2
        %v935 = vmax.f32 %v933, %v934
        %v936 = vrot.slane %v935, 1
        %v937 = vmax.f32 %v935, %v936
        %v938 = vsel %vm701, %v873, -inf
        %v939 = vsel %vm701, %v874, -inf
        %v940 = vmax.f32 %v938, %v939
        %v941 = vrot.slane %v940, 4
        %v942 = vmax.f32 %v940, %v941
        %v943 = vrot.slane %v942, 2
        %v944 = vmax.f32 %v942, %v943
        %v945 = vrot.slane %v944, 1
        %v946 = vmax.f32 %v944, %v945
        %v947 = vld [vmem:[%s3] sm:$0x1]
        %v949 = vperm.slane %v947, 0
        %v951 = vadd.f32 %v883, %v949
        %v952 = vadd.f32 %v892, %v949
        %v953 = vadd.f32 %v901, %v949
        %v954 = vadd.f32 %v910, %v949
        %v955 = vadd.f32 %v919, %v949
        %v956 = vadd.f32 %v928, %v949
        %v957 = vadd.f32 %v937, %v949
        %v958 = vadd.f32 %v946, %v949
        %v959 = vmax.f32 %v951, 0.0
        %v960 = vmax.f32 %v952, 0.0
        %v961 = vmax.f32 %v953, 0.0
        %v962 = vmax.f32 %v954, 0.0
        %v963 = vmax.f32 %v955, 0.0
        %v964 = vmax.f32 %v956, 0.0
        %v965 = vmax.f32 %v957, 0.0
        %v966 = vmax.f32 %v958, 0.0
        %v967 = vpack.c.bf16 %v959, %v959
        %v968 = vpack.c.bf16 %v960, %v960
        %v969 = vpack.c.bf16 %v961, %v961
        %v970 = vpack.c.bf16 %v962, %v962
        %v971 = vpack.c.bf16 %v963, %v963
        %v972 = vpack.c.bf16 %v964, %v964
        %v973 = vpack.c.bf16 %v965, %v965
        %v974 = vpack.c.bf16 %v966, %v966
        %v975 = vld [vmem:[%s4] sm:$0xf]
        %v976 = vld [vmem:[%s4 + $0x4] sm:$0xf]
        %v977 = vld [vmem:[%s4 + $0x8] sm:$0xf]
        %v978 = vld [vmem:[%s4 + $0xc] sm:$0xf]
        %v979 = vld [vmem:[%s4 + $0x10] sm:$0xf]
        %v980 = vld [vmem:[%s4 + $0x14] sm:$0xf]
        %v981 = vld [vmem:[%s4 + $0x18] sm:$0xf]
        %v982 = vld [vmem:[%s4 + $0x1c] sm:$0xf]
        %v983 = vld [vmem:[%s5] sm:$0x1]
        %v985 = vperm.slane %v983, 0
        %v995 = vunpack.c.l.b16 %v967
        %v996 = vunpack.c.l.b16 %v968
        %v997 = vunpack.c.l.b16 %v969
        %v998 = vunpack.c.l.b16 %v970
        %v999 = vunpack.c.l.b16 %v971
        %v1000 = vunpack.c.l.b16 %v972
        %v1001 = vunpack.c.l.b16 %v973
        %v1002 = vunpack.c.l.b16 %v974
        %v1003 = vrot.slane %v996, 7
        %vm1004 = vcmask 1041409
        %v1005 = vsel %vm1004, %v1003, %v995
        %v1006 = vrot.slane %v997, 6
        %vm1007 = vcmask 1042434
        %v1008 = vsel %vm1007, %v1006, %v1005
        %v1009 = vrot.slane %v998, 5
        %vm1010 = vcmask 1043459
        %v1011 = vsel %vm1010, %v1009, %v1008
        %v1012 = vrot.slane %v999, 4
        %vm1013 = vcmask 1044484
        %v1014 = vsel %vm1013, %v1012, %v1011
        %v1015 = vrot.slane %v1000, 3
        %vm1016 = vcmask 1045509
        %v1017 = vsel %vm1016, %v1015, %v1014
        %v1018 = vrot.slane %v1001, 2
        %vm1019 = vcmask 1046534
        %v1020 = vsel %vm1019, %v1018, %v1017
        %v1021 = vrot.slane %v1002, 1
        %vm1022 = vcmask 1047559
        %v1023 = vsel %vm1022, %v1021, %v1020
        %v1024 = vpack.c.b16 %v1023, %v1023
        %v1033 = vunpack.c.l.b16 %v975
        %v1034 = vunpack.c.l.b16 %v976
        %v1035 = vunpack.c.l.b16 %v977
        %v1036 = vunpack.c.l.b16 %v978
        %v1037 = vunpack.c.l.b16 %v979
        %v1038 = vunpack.c.l.b16 %v980
        %v1039 = vunpack.c.l.b16 %v981
        %v1040 = vunpack.c.l.b16 %v982
        %v1041 = vpack.c.b16 %v1034, %v1033
        %v1042 = vpack.c.b16 %v1036, %v1035
        %v1043 = vpack.c.b16 %v1038, %v1037
        %v1044 = vpack.c.b16 %v1040, %v1039
        %v1050 = vsel %vm701, %v1024, 0
        %1052 = vmatpush.bf16.msra.mxu0 0
        %1053 = vmatpush.bf16.msra.mxu0 0
        %1054 = vmatpush.bf16.msra.mxu0 0
        %1055 = vmatpush.bf16.msra.mxu0 0
        %1056 = vmatpush.bf16.msra.mxu0 %v1044
        %1057 = vmatpush.bf16.msra.mxu0 %v1043
        %1058 = vmatpush.bf16.msra.mxu0 %v1042
        %1059 = vmatpush.bf16.msra.mxu0 %v1041
        %1060 = vmatmul.bf16.gmra.mxu0 %v1050
        %v1061 = vpop.f32.mrf.mxu0
        %v1062 = vadd.f32 %v985, %v1061
        %v1063 = vpop.f32.mrf.mxu0
        %1064 = vdwg.mxu0
        %1065 = vst [vmem:[%s245] sm:$0xff] %v1062
        %s1066 = sand.u32 %s159, 1
        %s1067 = scalar_lea.sflag [#allocation3], %s1066
        %s1068 = sand.u32 %s159, 1
        %s1069 = smul.addr %s1068, 8
        %s1070 = scalar_lea.vmem [#allocation2], %s1069
        // Predicated region
        $region45: #{tpu_custom_call.1} parent=43 // pred_check
          %p1071 = pneg %p169
        $region46: #{tpu_custom_call.1} parent=43 // pred_check_branch
          %1073 = sbr.rel (%p1071) target = $region48
        $region47: #{tpu_custom_call.1} parent=43 // pred_region
          %1075 = vsyncadd %s1067, 0
          %s1076 = smul.addr %s20, 8
          %s1077 = scalar_lea.hbm %s6, %s1076
          %s1079 = sshll.u32 %s1070, 4
          %s1080 = int_to_ptr.vmem [resolvable:$true] %s1079
          %s1081 = sshll.u32 %s1077, 4
          %s1082 = int_to_ptr.hbm [resolvable:$true] %s1081
          %1084 = dma.vmem_to_hbm [thread:$0]  %s1080, 128, %s1082, %s1067
        $region48: #{tpu_custom_call.1} parent=43 // pred_fallthru
          _
      $region44: #{tpu_custom_call.1} parent=5 // pred_fallthru
        _
      %p1085 = scmp.le.s32.totalorder 2, %s15
      // Predicated region
      $region49: #{tpu_custom_call.1} parent=5 // pred_check
        %p1086 = pneg %p1085
      $region50: #{tpu_custom_call.1} parent=5 // pred_check_branch
        %1088 = sbr.rel (%p1086) target = $region52
      $region51: #{tpu_custom_call.1} parent=5 // pred_region
        %s1089 = ssub.s32 %s15, 2
        // Predicated region
        $region53: #{tpu_custom_call.1} parent=51 // pred_check
          %p1090 = pneg %p175
        $region54: #{tpu_custom_call.1} parent=51 // pred_check_branch
          %1092 = sbr.rel (%p1090) target = $region56
        $region55: #{tpu_custom_call.1} parent=51 // pred_region
          %s1093 = sand.u32 %s160, 1
          %s1094 = scalar_lea.sflag [#allocation3], %s1093
          %s1095 = sand.u32 %s160, 1
          %s1096 = smul.addr %s1095, 8
          %s1097 = scalar_lea.vmem [#allocation2], %s1096
          %1099 = dma.done %s1094, 128
        $region56: #{tpu_custom_call.1} parent=51 // pred_fallthru
          _
      $region52: #{tpu_custom_call.1} parent=5 // pred_fallthru
        _
    $region6: #{tpu_custom_call.1} parent=1 // loop_footer
      %s19 = sadd.s32 1, %s15
    $region7: #{tpu_custom_call.1} parent=1 // loop_footer_branch
      %14 = sbr.rel target = $region3
    $region8: #{tpu_custom_call.1} parent=1 // loop_exit
      _
    %1100 = vsyncpa [#allocation3], 1
    %s1101 = scalar_lea.sflag [#allocation3], 1
    %1102 = vsyncpa %s1101, 1

</llo_original>
